<compile_context>
chip_gen: v7x
topology: tpu7x:2x2x1
jax: 0.10.0
libtpu: 0.0.40
codegen_flags: <defaults>
</compile_context>

<pallas_src>
import jax
import jax.numpy as jnp
from jax.experimental import pallas as pl
from jax.experimental.pallas import tpu as pltpu


def _round_up(x, m):
    return (x + m - 1) // m * m


def _pick_tile(total, base, max_tile):
    """Largest multiple of `base` that divides `total`, capped at `max_tile`."""
    best = base
    t = base
    while t <= min(total, max_tile):
        if total % t == 0:
            best = t
        t += base
    return best


def _vmem_limit_bytes():
    """Per-generation scoped-VMEM limit: capacity - 16 MiB, capped at 100 MiB."""
    try:
        cap = pltpu.get_tpu_info().vmem_capacity_bytes
    except Exception:
        cap = 64 * 1024 * 1024  # conservative (v7x-sized) fallback
    return int(min(max(cap - 16 * 1024 * 1024, 32 * 1024 * 1024),
                   100 * 1024 * 1024))


# ------------------------------------------------------------------
# Kernel 1: Linear + bias + ReLU, grid = (N tiles, K tiles).
# K is the reduction axis (last, "arbitrary"); f32 accumulator scratch.
# ------------------------------------------------------------------
def _linear_relu_kernel(x_ref, w_ref, b_ref, o_ref, acc_ref):
    k = pl.program_id(1)

    @pl.when(k == 0)
    def _():
        acc_ref[...] = jnp.zeros_like(acc_ref)

    acc_ref[...] += jnp.dot(x_ref[...], w_ref[...],
                            preferred_element_type=jnp.float32)

    @pl.when(k == pl.num_programs(1) - 1)
    def _():
        o_ref[...] = jnp.maximum(acc_ref[...] + b_ref[...],
                                 0.0).astype(o_ref.dtype)


def pallas_linear_relu(x, w, b, *, tile_n=512, tile_k_max=4096,
                       out_dtype=jnp.bfloat16):
    """relu(x @ w + b).  x: (M, K) bf16, w: (K, N) bf16, b: (N,) f32.

    M must be a multiple of 8 (caller pads ROIs to a multiple of 16).
    K is zero-padded internally to a lane-friendly multiple of 512.
    """
    M, K = x.shape
    K2, N = w.shape
    assert K == K2 and b.shape == (N,)
    assert M % 8 == 0

    tn = min(tile_n, N)
    assert N % tn == 0

    K_pad = _round_up(K, 512)
    tk = _pick_tile(K_pad, 512, tile_k_max)
    if K_pad != K:
        # Zero padding contributes nothing to the matmul.
        x = jnp.pad(x, ((0, 0), (0, K_pad - K)))
        w = jnp.pad(w, ((0, K_pad - K), (0, 0)))
    b2 = b.reshape(1, N).astype(jnp.float32)

    return pl.pallas_call(
        _linear_relu_kernel,
        out_shape=jax.ShapeDtypeStruct((M, N), out_dtype),
        grid_spec=pltpu.PrefetchScalarGridSpec(
            num_scalar_prefetch=0,
            grid=(N // tn, K_pad // tk),
            in_specs=[
                pl.BlockSpec((M, tk), lambda j, k: (0, k)),   # activations K-tile
                pl.BlockSpec((tk, tn), lambda j, k: (k, j)),  # weight tile
                pl.BlockSpec((1, tn), lambda j, k: (0, j)),   # bias N-tile
            ],
            out_specs=pl.BlockSpec((M, tn), lambda j, k: (0, j)),
            scratch_shapes=[pltpu.VMEM((M, tn), jnp.float32)],
        ),
        compiler_params=pltpu.CompilerParams(
            dimension_semantics=("parallel", "arbitrary"),
            vmem_limit_bytes=_vmem_limit_bytes(),
        ),
    )(x, w, b2)


# ------------------------------------------------------------------
# Kernel 2: fused [Linear(4096,4096)+ReLU] -> fused heads matmul.
# 2-D grid: leading "parallel" axis splits the N tiles of layer 2 across
# TensorCores (v7x megacore); inner axis walks that split's tiles and
# accumulates directly into this split's (M, Np) partial output block.
# ------------------------------------------------------------------
def _mlp2_heads_kernel(h1_ref, w2_ref, b2_ref, wh_ref, bh_ref, o_ref):
    c = pl.program_id(0)   # megacore split (partial-output) index
    j = pl.program_id(1)   # layer-2 N tile == K slice of the heads matmul

    h2 = jnp.dot(h1_ref[...], w2_ref[...], preferred_element_type=jnp.float32)
    h2 = jnp.maximum(h2 + b2_ref[...], 0.0)
    part = jnp.dot(h2.astype(wh_ref.dtype), wh_ref[...],
                   preferred_element_type=jnp.float32)

    @pl.when(j == 0)
    def _():
        # Fold zero-init + head bias into the first step (bias only on split 0).
        bias = jnp.where(c == 0, bh_ref[...], jnp.zeros_like(bh_ref[...]))
        o_ref[...] = part + bias

    @pl.when(j > 0)
    def _():
        o_ref[...] += part


def pallas_mlp2_heads(h1, w2, b2, w_heads, b_heads, *, tile_n=512, n_splits=2):
    """heads( relu(h1 @ w2 + b2) ) with the padded, concatenated head weight."""
    M, H = h1.shape
    H2, H3 = w2.shape
    assert H == H2 == H3 and b2.shape == (H,)
    Hh, Np = w_heads.shape
    assert Hh == H and b_heads.shape == (Np,) and Np % 128 == 0
    assert M % 8 == 0

    tn = min(tile_n, H)
    assert H % tn == 0
    n_tiles = H // tn
    if n_tiles % n_splits != 0:
        n_splits = 1
    tpc = n_tiles // n_splits            # tiles per split

    b2r = b2.reshape(1, H).astype(jnp.float32)
    bhr = b_heads.reshape(1, Np).astype(jnp.float32)

    partials = pl.pallas_call(
        _mlp2_heads_kernel,
        out_shape=jax.ShapeDtypeStruct((n_splits, M, Np), jnp.float32),
        grid_spec=pltpu.PrefetchScalarGridSpec(
            num_scalar_prefetch=0,
            grid=(n_splits, tpc),
            in_specs=[
                pl.BlockSpec((M, H), lambda c, j: (0, 0)),             # h1 (resident)
                pl.BlockSpec((H, tn), lambda c, j: (0, c * tpc + j)),  # w2 N-tile
                pl.BlockSpec((1, tn), lambda c, j: (0, c * tpc + j)),  # b2 tile
                pl.BlockSpec((tn, Np), lambda c, j: (c * tpc + j, 0)), # head K-slice
                pl.BlockSpec((1, Np), lambda c, j: (0, 0)),            # head bias
            ],
            out_specs=pl.BlockSpec((None, M, Np), lambda c, j: (c, 0, 0)),
        ),
        compiler_params=pltpu.CompilerParams(
            dimension_semantics=("parallel", "arbitrary"),
            vmem_limit_bytes=_vmem_limit_bytes(),
        ),
    )(h1, w2, b2r, w_heads, bhr)

    # Tiny (n_splits, M, Np) f32 add to merge the per-core partial sums.
    return partials.sum(axis=0) if n_splits > 1 else partials[0]


# ------------------------------------------------------------------
# MLPDetector (parameters created deterministically in-script)
# ------------------------------------------------------------------
class MLPDetectorPallas:
    HIDDEN = 4096

    def __init__(self, in_channels, n_classes, key=None):
        self.in_channels = in_channels
        self.n_classes = n_classes
        hidden = self.HIDDEN
        in_feats = in_channels * 7 * 7

        key = jax.random.PRNGKey(0) if key is None else key
        keys = jax.random.split(key, 8)

        def init(k, shape):
            return jax.random.normal(k, shape, dtype=jnp.float32) * 0.02

        # Weights stored as (in_features, out_features), bf16 for the MXU.
        self.w1 = init(keys[0], (in_feats, hidden)).astype(jnp.bfloat16)
        self.b1 = init(keys[1], (hidden,))
        self.w2 = init(keys[2], (hidden, hidden)).astype(jnp.bfloat16)
        self.b2 = init(keys[3], (hidden,))

        # cls_score + bbox_pred fused into one lane-dense head matrix.
        w_cls = init(keys[4], (hidden, n_classes))
        b_cls = init(keys[5], (n_classes,))
        w_bbox = init(keys[6], (hidden, n_classes * 4))
        b_bbox = init(keys[7], (n_classes * 4,))

        n_head = 5 * n_classes
        n_pad = _round_up(n_head, 128)             # lane-dense output (>=128)
        w_heads = jnp.zeros((hidden, n_pad), jnp.float32)
        w_heads = w_heads.at[:, :n_classes].set(w_cls)
        w_heads = w_heads.at[:, n_classes:n_head].set(w_bbox)
        b_heads = jnp.zeros((n_pad,), jnp.float32)
        b_heads = b_heads.at[:n_head].set(jnp.concatenate([b_cls, b_bbox]))

        self.w_heads = w_heads.astype(jnp.bfloat16)
        self.b_heads = b_heads
        self._n_head = n_head
        self._n_pad = n_pad

    def __call__(self, pooling):
        # pooling: (num_rois, C, 7, 7) -> flatten like torch .reshape(-1, C*49)
        M = pooling.shape[0]
        x = pooling.reshape(M, self.in_channels * 7 * 7).astype(jnp.bfloat16)

        # Pad ROI count to a multiple of 16 (bf16 sublane packing, unmasked
        # f32 output stores); padded rows are row-independent and sliced off.
        M_pad = _round_up(M, 16)
        if M_pad != M:
            x = jnp.pad(x, ((0, M_pad - M), (0, 0)))

        # mlp_head layer 1 (Dropout = eval-mode identity)
        h1 = pallas_linear_relu(x, self.w1, self.b1, tile_n=512)

        # fused: mlp_head layer 2 + cls_score + bbox_pred
        head = pallas_mlp2_heads(h1, self.w2, self.b2,
                                 self.w_heads, self.b_heads,
                                 tile_n=512, n_splits=2)

        n = self.n_classes
        scores_logits = head[:M, :n]
        deltas = head[:M, n:self._n_head]
        return scores_logits, deltas


# ------------------------------------------------------------------
# Reference (pure JAX, f32 math with matching bf16 rounding points)
# ------------------------------------------------------------------
def reference_forward(model, pooling):
    f32 = lambda a: a.astype(jnp.float32)
    hi = jax.lax.Precision.HIGHEST
    M = pooling.shape[0]
    x = f32(pooling.reshape(M, -1).astype(jnp.bfloat16))
    h1 = jnp.maximum(jnp.dot(x, f32(model.w1), precision=hi) + model.b1, 0.0)
    h1 = f32(h1.astype(jnp.bfloat16))
    h2 = jnp.maximum(jnp.dot(h1, f32(model.w2), precision=hi) + model.b2, 0.0)
    h2 = f32(h2.astype(jnp.bfloat16))
    head = jnp.dot(h2, f32(model.w_heads), precision=hi) + model.b_heads
    n = model.n_classes
    return head[:, :n], head[:, n:5 * n]


if __name__ == "__main__":
    # Small deterministic example: 8 ROIs, in_channels=8, 7x7 pooled features,
    # n_classes=8 (hidden stays at the module's hard-coded 4096).
    in_channels = 8
    n_classes = 8
    num_rois = 8

    key = jax.random.PRNGKey(0)
    k_in, k_params = jax.random.split(key)
    pooling = jax.random.normal(
        k_in, (num_rois, in_channels, 7, 7), dtype=jnp.float32
    )

    model = MLPDetectorPallas(in_channels, n_classes, key=k_params)

    scores_logits, deltas = model(pooling)
    jax.block_until_ready((scores_logits, deltas))

    assert scores_logits.shape == (num_rois, n_classes)
    assert deltas.shape == (num_rois, n_classes * 4)

    ref_scores, ref_deltas = reference_forward(model, pooling)
    assert jnp.allclose(scores_logits, ref_scores, atol=1e-2, rtol=1e-2)
    assert jnp.allclose(deltas, ref_deltas, atol=1e-2, rtol=1e-2)

    print("KERNEL_OK")
</pallas_src>

<mosaic_0001>
module attributes {stable_mosaic.version = 11 : i64} {
  func.func @_linear_relu_kernel(%arg0: i32, %arg1: i32, %arg2: memref<16x512xbf16, #tpu.memory_space<vmem>>, %arg3: memref<512x512xbf16, #tpu.memory_space<vmem>>, %arg4: memref<1x512xf32, #tpu.memory_space<vmem>>, %arg5: memref<16x512xbf16, #tpu.memory_space<vmem>>, %arg6: memref<16x512xf32, #tpu.memory_space<vmem>>) attributes {dimension_semantics = [#tpu.dimension_semantics<parallel>, #tpu.dimension_semantics<arbitrary>], iteration_bounds = array<i64: 8, 1>, scalar_prefetch = 0 : i64, scratch_operands = 1 : i64, tpu.core_type = #tpu.core_type<tc>, window_params = [{transform_indices = @transform_0, window_bounds = array<i64: 16, 512>}, {transform_indices = @transform_1, window_bounds = array<i64: 512, 512>}, {transform_indices = @transform_2, window_bounds = array<i64: 1, 512>}, {transform_indices = @transform_3, window_bounds = array<i64: 16, 512>}]} {
    %c0_i32 = arith.constant 0 : i32
    %0 = arith.cmpi eq, %arg1, %c0_i32 : i32
    %1 = arith.extui %0 : i1 to i32
    %c0_i32_0 = arith.constant 0 : i32
    %2 = arith.cmpi ne, %1, %c0_i32_0 : i32
    scf.if %2 {
      %cst_10 = arith.constant 0.000000e+00 : f32
      %12 = vector.broadcast %cst_10 : f32 to vector<16x512xf32>
      %c0_11 = arith.constant 0 : index
      %c0_12 = arith.constant 0 : index
      %13 = vector.load %arg6[%c0_11, %c0_12] : memref<16x512xf32, #tpu.memory_space<vmem>>, vector<16x512xf32>
      tpu.vector_store %arg6[%c0_11, %c0_12], %12 {strides = array<i32>} : memref<16x512xf32, #tpu.memory_space<vmem>>, vector<16x512xf32>,
    } else {
    }
    %c0 = arith.constant 0 : index
    %c0_1 = arith.constant 0 : index
    %3 = vector.load %arg6[%c0, %c0_1] : memref<16x512xf32, #tpu.memory_space<vmem>>, vector<16x512xf32>
    %c0_2 = arith.constant 0 : index
    %c0_3 = arith.constant 0 : index
    %4 = vector.load %arg2[%c0_2, %c0_3] : memref<16x512xbf16, #tpu.memory_space<vmem>>, vector<16x512xbf16>
    %c0_4 = arith.constant 0 : index
    %c0_5 = arith.constant 0 : index
    %5 = vector.load %arg3[%c0_4, %c0_5] : memref<512x512xbf16, #tpu.memory_space<vmem>>, vector<512x512xbf16>
    %cst = arith.constant dense<0.000000e+00> : vector<16x512xf32>
    %6 = tpu.matmul %4, %5, %cst {dimension_numbers = #tpu.dot_dimension_numbers<[1], [0], [0], [1], [0, 0, 1, 1], [], []>} : vector<16x512xbf16>, vector<512x512xbf16>, vector<16x512xf32> -> vector<16x512xf32>
    %7 = arith.addf %3, %6 : vector<16x512xf32>
    %c0_6 = arith.constant 0 : index
    %c0_7 = arith.constant 0 : index
    %8 = vector.load %arg6[%c0_6, %c0_7] : memref<16x512xf32, #tpu.memory_space<vmem>>, vector<16x512xf32>
    tpu.vector_store %arg6[%c0_6, %c0_7], %7 {strides = array<i32>} : memref<16x512xf32, #tpu.memory_space<vmem>>, vector<16x512xf32>,
    %c0_i32_8 = arith.constant 0 : i32
    %9 = arith.cmpi eq, %arg1, %c0_i32_8 : i32
    %10 = arith.extui %9 : i1 to i32
    %c0_i32_9 = arith.constant 0 : i32
    %11 = arith.cmpi ne, %10, %c0_i32_9 : i32
    scf.if %11 {
      %c0_10 = arith.constant 0 : index
      %c0_11 = arith.constant 0 : index
      %12 = vector.load %arg6[%c0_10, %c0_11] : memref<16x512xf32, #tpu.memory_space<vmem>>, vector<16x512xf32>
      %c0_12 = arith.constant 0 : index
      %c0_13 = arith.constant 0 : index
      %13 = vector.load %arg4[%c0_12, %c0_13] : memref<1x512xf32, #tpu.memory_space<vmem>>, vector<1x512xf32>
      %14 = vector.broadcast %13 : vector<1x512xf32> to vector<16x512xf32>
      %15 = arith.addf %12, %14 : vector<16x512xf32>
      %cst_14 = arith.constant 0.000000e+00 : f32
      %16 = vector.broadcast %cst_14 : f32 to vector<16x512xf32>
      %17 = arith.maximumf %15, %16 : vector<16x512xf32>
      %18 = arith.truncf %17 : vector<16x512xf32> to vector<16x512xbf16>
      %c0_15 = arith.constant 0 : index
      %c0_16 = arith.constant 0 : index
      %19 = vector.load %arg5[%c0_15, %c0_16] : memref<16x512xbf16, #tpu.memory_space<vmem>>, vector<16x512xbf16>
      tpu.vector_store %arg5[%c0_15, %c0_16], %18 {strides = array<i32>} : memref<16x512xbf16, #tpu.memory_space<vmem>>, vector<16x512xbf16>,
    } else {
    }
    return
  }
  func.func @transform_0(%arg0: i32, %arg1: i32) -> (i32, i32) {
    %c0_i32 = arith.constant 0 : i32
    %c0_i32_0 = arith.constant 0 : i32
    return %c0_i32, %arg1 : i32, i32
  }
  func.func @transform_1(%arg0: i32, %arg1: i32) -> (i32, i32) {
    %c0_i32 = arith.constant 0 : i32
    return %arg1, %arg0 : i32, i32
  }
  func.func @transform_2(%arg0: i32, %arg1: i32) -> (i32, i32) {
    %c0_i32 = arith.constant 0 : i32
    %c0_i32_0 = arith.constant 0 : i32
    return %c0_i32, %arg0 : i32, i32
  }
  func.func @transform_3(%arg0: i32, %arg1: i32) -> (i32, i32) {
    %c0_i32 = arith.constant 0 : i32
    %c0_i32_0 = arith.constant 0 : i32
    return %c0_i32, %arg0 : i32, i32
  }
}

</mosaic_0001>

<llo_original>
// kernel: tpu_custom_call.1
$region0: #{tpu_custom_call.1}
  #allocation0 [shape = 'u32[]', space=smem, size = 0x4, offset = 0x4, fixed_abs, tag = 'smem constant byte address 0x4 - core index']
  #allocation1 [shape = 'u32[144,128]{1,0:T(1,128)}', space=vmem, size = 0x12000, scoped, tag = 'internal scratch']
  #allocation2 [shape = 'f32[16,512]{1,0:T(8,128)}', space=vmem, size = 0x8000, scoped, tag = 'scratch operand']
  %s0 = inlined_call_operand.hbm [shape: bf16[16,512], index: 0, kind: input, shape index: {}]
  %s1 = inlined_call_operand.hbm [shape: bf16[512,4096], index: 1, kind: input, shape index: {}]
  %s2 = inlined_call_operand.hbm [shape: f32[1,4096], index: 2, kind: input, shape index: {}]
  %s3 = inlined_call_operand.hbm [shape: bf16[16,4096], index: 3, kind: output, shape index: {}]
  %s4 = sld [smem:[#allocation0]]
  $region65: #{tpu_custom_call.1} parent=0
    _
  %s6 = ssub.s32 1, %s4
  %s7 = scalar_select 0, %s6, %s4
  $region1: #{tpu_custom_call.1} parent=0
    #allocation3 [shape = 'u8[16384]{0}', space=vmem, size = 0x4000, scoped, tag = 'input window, operand 0, single buffered']
    #allocation4 [shape = 's32[2]{0}', space=sflag, size = 0x8, scoped, tag = 'scoped memory for tpu_custom_call.1']
    #allocation5 [shape = 's32[2]{0}', space=sflag, size = 0x8, scoped, tag = 'scoped memory for tpu_custom_call.1']
    #allocation6 [shape = 'u8[1048576]{0}', space=vmem, size = 0x100000, scoped, tag = 'input window, operand 1']
    #allocation7 [shape = 's32[2]{0}', space=sflag, size = 0x8, scoped, tag = 'scoped memory for tpu_custom_call.1']
    #allocation8 [shape = 'u8[4096]{0}', space=vmem, size = 0x1000, scoped, tag = 'input window, operand 2']
    #allocation9 [shape = 'u8[32768]{0}', space=vmem, size = 0x8000, scoped, tag = 'output window, operand 0']
    %8 = vsyncpa [#allocation4], 0
    %9 = vsyncpa [#allocation7], 0
    %s10 = scalar_lea.sflag [#allocation7], 1
    %11 = vsyncpa %s10, 0
    %12 = vsyncpa [#allocation5], 0
    %s13 = scalar_lea.sflag [#allocation5], 1
    %14 = vsyncpa %s13, 0
    loop: start=0, step=1, limit=10
    $region2: #{tpu_custom_call.1} parent=1 // loop_pre_header
      _
    $region3: #{tpu_custom_call.1} parent=1 // loop_header
      %s16 = sphi 0, %s20
      %p17 = scmp.ge.s32.totalorder %s16, 10
      %s23 = sphi 0, %s35
      %s24 = sphi 0, %s31
      %s25 = sphi 0, %s23
      %s26 = sphi 0, %s24
      %s27 = sphi 0, %s25
      %s28 = sphi 0, %s26
      %s38 = sphi 0, %s40
      %s41 = sphi 0, %s38
      %s42 = sphi 0, %s41
      %s58 = sphi 0, %s42
      %s66 = sphi 0, %s68
      %s69 = sphi 0, %s66
      %s70 = sphi 0, %s69
      %s86 = sphi 0, %s70
      %s92 = sphi 0, %s94
      %s95 = sphi 0, %s92
      %s96 = sphi 0, %s95
      %s112 = sphi 0, %s96
      %s118 = sphi 0, %s120
      %s121 = sphi 0, %s118
      %s122 = sphi 0, %s121
      %s138 = sphi 0, %s122
    $region4: #{tpu_custom_call.1} parent=1 // loop_header_branch
      %19 = sbr.rel (%p17) target = $region8
    $region5: #{tpu_custom_call.1} parent=1 // loop_body
      %s21 = ssub.s32 %s16, 1
      %s22 = ssub.s32 %s16, 2
      %s29 = sadd.s32 1, %s24
      %p30 = scmp.ge.s32.totalorder %s29, 1
      %s31 = scalar_select %p30, 0, %s29
      %s32 = sadd.s32 1, %s23
      %s33 = scalar_select %p30, %s32, %s23
      %p34 = scmp.ge.s32.totalorder %s33, 8
      %s35 = scalar_select %p34, 0, %s33
      %s36 = ssub.s32 %s24, %s31
      %p37 = scmp.eq.s32.totalorder %s36, 0
      %s39 = sadd.s32 %s38, 1
      %s40 = scalar_select %p37, %s38, %s39
      %p43 = pneg %p37
      %p44 = scmp.eq.s32.totalorder %s16, 7
      %p45 = por %p43, %p44
      %p46 = scmp.ne.s32.totalorder %s38, %s41
      %p47 = scmp.eq.s32.totalorder %s16, 0
      %p48 = por %p46, %p47
      %p49 = scmp.ne.s32.totalorder %s38, %s41
      %p50 = scmp.eq.s32.totalorder %s21, 7
      %p51 = por %p49, %p50
      %p52 = scmp.ne.s32.totalorder %s41, %s42
      %p53 = scmp.eq.s32.totalorder %s21, 0
      %p54 = por %p52, %p53
      %p55 = scmp.ne.s32.totalorder %s41, %s42
      %p56 = scmp.eq.s32.totalorder %s22, 7
      %p57 = por %p55, %p56
      %p59 = scmp.ne.s32.totalorder %s42, %s58
      %p60 = scmp.eq.s32.totalorder %s22, 0
      %p61 = por %p59, %p60
      %s62 = ssub.s32 %s24, %s31
      %s63 = ssub.s32 %s23, %s35
      %s64 = sor.u32 %s62, %s63
      %p65 = scmp.eq.s32.totalorder %s64, 0
      %s67 = sadd.s32 %s66, 1
      %s68 = scalar_select %p65, %s66, %s67
      %p71 = pneg %p65
      %p72 = scmp.eq.s32.totalorder %s16, 7
      %p73 = por %p71, %p72
      %p74 = scmp.ne.s32.totalorder %s66, %s69
      %p75 = scmp.eq.s32.totalorder %s16, 0
      %p76 = por %p74, %p75
      %p77 = scmp.ne.s32.totalorder %s66, %s69
      %p78 = scmp.eq.s32.totalorder %s21, 7
      %p79 = por %p77, %p78
      %p80 = scmp.ne.s32.totalorder %s69, %s70
      %p81 = scmp.eq.s32.totalorder %s21, 0
      %p82 = por %p80, %p81
      %p83 = scmp.ne.s32.totalorder %s69, %s70
      %p84 = scmp.eq.s32.totalorder %s22, 7
      %p85 = por %p83, %p84
      %p87 = scmp.ne.s32.totalorder %s70, %s86
      %p88 = scmp.eq.s32.totalorder %s22, 0
      %p89 = por %p87, %p88
      %s90 = ssub.s32 %s23, %s35
      %p91 = scmp.eq.s32.totalorder %s90, 0
      %s93 = sadd.s32 %s92, 1
      %s94 = scalar_select %p91, %s92, %s93
      %p97 = pneg %p91
      %p98 = scmp.eq.s32.totalorder %s16, 7
      %p99 = por %p97, %p98
      %p100 = scmp.ne.s32.totalorder %s92, %s95
      %p101 = scmp.eq.s32.totalorder %s16, 0
      %p102 = por %p100, %p101
      %p103 = scmp.ne.s32.totalorder %s92, %s95
      %p104 = scmp.eq.s32.totalorder %s21, 7
      %p105 = por %p103, %p104
      %p106 = scmp.ne.s32.totalorder %s95, %s96
      %p107 = scmp.eq.s32.totalorder %s21, 0
      %p108 = por %p106, %p107
      %p109 = scmp.ne.s32.totalorder %s95, %s96
      %p110 = scmp.eq.s32.totalorder %s22, 7
      %p111 = por %p109, %p110
      %p113 = scmp.ne.s32.totalorder %s96, %s112
      %p114 = scmp.eq.s32.totalorder %s22, 0
      %p115 = por %p113, %p114
      %s116 = ssub.s32 %s23, %s35
      %p117 = scmp.eq.s32.totalorder %s116, 0
      %s119 = sadd.s32 %s118, 1
      %s120 = scalar_select %p117, %s118, %s119
      %p123 = pneg %p117
      %p124 = scmp.eq.s32.totalorder %s16, 7
      %p125 = por %p123, %p124
      %p126 = scmp.ne.s32.totalorder %s118, %s121
      %p127 = scmp.eq.s32.totalorder %s16, 0
      %p128 = por %p126, %p127
      %p129 = scmp.ne.s32.totalorder %s118, %s121
      %p130 = scmp.eq.s32.totalorder %s21, 7
      %p131 = por %p129, %p130
      %p132 = scmp.ne.s32.totalorder %s121, %s122
      %p133 = scmp.eq.s32.totalorder %s21, 0
      %p134 = por %p132, %p133
      %p135 = scmp.ne.s32.totalorder %s121, %s122
      %p136 = scmp.eq.s32.totalorder %s22, 7
      %p137 = por %p135, %p136
      %p139 = scmp.ne.s32.totalorder %s122, %s138
      %p140 = scmp.eq.s32.totalorder %s22, 0
      %p141 = por %p139, %p140
      %p142 = scmp.le.s32.totalorder 1, %s16
      %p143 = scmp.lt.s32.totalorder %s16, 9
      %p144 = pnand %p142, %p143
      %p145 = pneg %p144
      // Predicated region
      $region9: #{tpu_custom_call.1} parent=5 // pred_check
        _
      $region10: #{tpu_custom_call.1} parent=5 // pred_check_branch
        %147 = sbr.rel (%p144) target = $region12
      $region11: #{tpu_custom_call.1} parent=5 // pred_region
        %s148 = ssub.s32 %s16, 1
        // Predicated region
        $region13: #{tpu_custom_call.1} parent=11 // pred_check
          %p149 = pneg %p54
        $region14: #{tpu_custom_call.1} parent=11 // pred_check_branch
          %151 = sbr.rel (%p149) target = $region16
        $region15: #{tpu_custom_call.1} parent=11 // pred_region
          %s152 = smul.u32 4, %s26
          %s154 = ssub.s32 512, 512
          %155 = vsyncadd [#allocation4], %s154
          %s156 = smul.addr %s152, 64
          %s157 = scalar_lea.hbm %s0, %s156
          %s158 = sshll.u32 [#allocation3], 4
          %s159 = int_to_ptr.vmem [resolvable:$true] %s158
          %164 = dma.hbm_to_vmem [thread:$0]  %s157, 512, %s159, [#allocation4], 256, 256, 16
        $region16: #{tpu_custom_call.1} parent=11 // pred_fallthru
          _
      $region12: #{tpu_custom_call.1} parent=5 // pred_fallthru
        _
      %p165 = scmp.lt.s32.totalorder %s16, 8
      // Predicated region
      $region17: #{tpu_custom_call.1} parent=5 // pred_check
        %p166 = pneg %p165
      $region18: #{tpu_custom_call.1} parent=5 // pred_check_branch
        %168 = sbr.rel (%p166) target = $region20
      $region19: #{tpu_custom_call.1} parent=5 // pred_region
        // Predicated region
        $region21: #{tpu_custom_call.1} parent=19 // pred_check
          %p169 = pneg %p76
        $region22: #{tpu_custom_call.1} parent=19 // pred_check_branch
          %171 = sbr.rel (%p169) target = $region24
        $region23: #{tpu_custom_call.1} parent=19 // pred_region
          %s172 = sand.u32 %s16, 1
          %s173 = scalar_lea.sflag [#allocation7], %s172
          %s174 = sand.u32 %s66, 1
          %s175 = smul.addr %s174, 1024
          %s176 = scalar_lea.vmem [#allocation6], %s175
          %s177 = smul.u32 64, %s24
          %s178 = smul.u32 4, %s23
          %s180 = ssub.s32 16384, 16384
          %181 = vsyncadd %s173, %s180
          %s182 = smul.addr %s177, 32
          %s183 = sadd.s32 %s178, %s182
          %s184 = smul.addr %s183, 64
          %s185 = scalar_lea.hbm %s1, %s184
          %s186 = sshll.u32 %s176, 4
          %s187 = int_to_ptr.vmem [resolvable:$true] %s186
          %192 = dma.hbm_to_vmem [thread:$0]  %s185, 16384, %s187, %s173, 2048, 256, 16
        $region24: #{tpu_custom_call.1} parent=19 // pred_fallthru
          _
        // Predicated region
        $region25: #{tpu_custom_call.1} parent=19 // pred_check
          %p193 = pneg %p102
        $region26: #{tpu_custom_call.1} parent=19 // pred_check_branch
          %195 = sbr.rel (%p193) target = $region28
        $region27: #{tpu_custom_call.1} parent=19 // pred_region
          %s196 = sand.u32 %s16, 1
          %s197 = scalar_lea.sflag [#allocation7], %s196
          %s198 = sand.u32 %s92, 1
          %s199 = smul.addr %s198, 4
          %s200 = scalar_lea.vmem [#allocation8], %s199
          %s201 = smul.u32 4, %s23
          %s203 = ssub.s32 64, 64
          %204 = vsyncadd %s197, %s203
          %s205 = smul.addr %s201, 16
          %s206 = scalar_lea.hbm %s2, %s205
          %s208 = sshll.u32 %s200, 4
          %s209 = int_to_ptr.vmem [resolvable:$true] %s208
          %211 = dma.hbm_to_vmem [thread:$0]  %s206, 64, %s209, %s197
        $region28: #{tpu_custom_call.1} parent=19 // pred_fallthru
          _
      $region20: #{tpu_custom_call.1} parent=5 // pred_fallthru
        _
      %p212 = scmp.le.s32.totalorder 1, %s16
      %p213 = scmp.lt.s32.totalorder %s16, 9
      %p214 = pnand %p212, %p213
      %p215 = pneg %p214
      // Predicated region
      $region29: #{tpu_custom_call.1} parent=5 // pred_check
        _
      $region30: #{tpu_custom_call.1} parent=5 // pred_check_branch
        %217 = sbr.rel (%p214) target = $region32
      $region31: #{tpu_custom_call.1} parent=5 // pred_region
        %s218 = ssub.s32 %s16, 1
        // Predicated region
        $region33: #{tpu_custom_call.1} parent=31 // pred_check
          %p219 = pneg %p54
        $region34: #{tpu_custom_call.1} parent=31 // pred_check_branch
          %221 = sbr.rel (%p219) target = $region36
        $region35: #{tpu_custom_call.1} parent=31 // pred_region
          %222 = dma.done [#allocation4], 512
        $region36: #{tpu_custom_call.1} parent=31 // pred_fallthru
          _
        %s223 = sand.u32 %s21, 1
        %s224 = scalar_lea.sflag [#allocation7], %s223
        %s225 = sand.u32 %s69, 1
        %s226 = smul.addr %s225, 1024
        %s227 = scalar_lea.vmem [#allocation6], %s226
        // Predicated region
        $region37: #{tpu_custom_call.1} parent=31 // pred_check
          %p228 = pneg %p82
        $region38: #{tpu_custom_call.1} parent=31 // pred_check_branch
          %230 = sbr.rel (%p228) target = $region40
        $region39: #{tpu_custom_call.1} parent=31 // pred_region
          %231 = dma.done %s224, 16384
        $region40: #{tpu_custom_call.1} parent=31 // pred_fallthru
          _
        %s232 = sand.u32 %s21, 1
        %s233 = scalar_lea.sflag [#allocation7], %s232
        %s234 = sand.u32 %s95, 1
        %s235 = smul.addr %s234, 4
        %s236 = scalar_lea.vmem [#allocation8], %s235
        // Predicated region
        $region41: #{tpu_custom_call.1} parent=31 // pred_check
          %p237 = pneg %p108
        $region42: #{tpu_custom_call.1} parent=31 // pred_check_branch
          %239 = sbr.rel (%p237) target = $region44
        $region43: #{tpu_custom_call.1} parent=31 // pred_region
          %240 = dma.done %s233, 64
        $region44: #{tpu_custom_call.1} parent=31 // pred_fallthru
          _
        %p241 = pneg %p54
        %p242 = pneg %p51
        %s243 = sand.u32 %s21, 1
        %s244 = scalar_lea.sflag [#allocation7], %s243
        %s245 = sand.u32 %s69, 1
        %s246 = smul.addr %s245, 1024
        %s247 = scalar_lea.vmem [#allocation6], %s246
        %p248 = pneg %p82
        %p249 = pneg %p79
        %s250 = sand.u32 %s21, 1
        %s251 = scalar_lea.sflag [#allocation7], %s250
        %s252 = sand.u32 %s95, 1
        %s253 = smul.addr %s252, 4
        %s254 = scalar_lea.vmem [#allocation8], %s253
        %p255 = pneg %p108
        %p256 = pneg %p105
        %p257 = pneg %p134
        %p258 = pneg %p131
        %s259 = sand.u32 %s121, 1
        %s260 = scalar_lea.sflag [#allocation5], %s259
        %s261 = sand.u32 %s121, 1
        %s262 = smul.addr %s261, 32
        %s263 = scalar_lea.vmem [#allocation9], %s262
        %s264 = smul.u32 4, %s26
        %s265 = smul.u32 64, %s26
        %s266 = smul.u32 4, %s25
        %s267 = smul.u32 4, %s25
        %s268 = smul.u32 4, %s25
        %p269 = scmp.eq.s32.totalorder %s26, 0
        // Predicated region
        $region45: #{tpu_custom_call.1} parent=31 // pred_check
          %p270 = pneg %p269
        $region46: #{tpu_custom_call.1} parent=31 // pred_check_branch
          %272 = sbr.rel (%p270) target = $region48
        $region47: #{tpu_custom_call.1} parent=31 // pred_region
          %273 = vst [vmem:[#allocation2] sm:$0xff] 0.0
          %274 = vst [vmem:[#allocation2 + $0x8] sm:$0xff] 0.0
          %275 = vst [vmem:[#allocation2 + $0x10] sm:$0xff] 0.0
          %276 = vst [vmem:[#allocation2 + $0x18] sm:$0xff] 0.0
          %277 = vst [vmem:[#allocation2 + $0x20] sm:$0xff] 0.0
          %278 = vst [vmem:[#allocation2 + $0x28] sm:$0xff] 0.0
          %279 = vst [vmem:[#allocation2 + $0x30] sm:$0xff] 0.0
          %280 = vst [vmem:[#allocation2 + $0x38] sm:$0xff] 0.0
        $region48: #{tpu_custom_call.1} parent=31 // pred_fallthru
          _
        %v281 = vld [vmem:[#allocation2] sm:$0xff]
        %v282 = vld [vmem:[#allocation2 + $0x8] sm:$0xff]
        %v283 = vld [vmem:[#allocation2 + $0x10] sm:$0xff]
        %v284 = vld [vmem:[#allocation2 + $0x18] sm:$0xff]
        %v285 = vld [vmem:[#allocation2 + $0x20] sm:$0xff]
        %v286 = vld [vmem:[#allocation2 + $0x28] sm:$0xff]
        %v287 = vld [vmem:[#allocation2 + $0x30] sm:$0xff]
        %v288 = vld [vmem:[#allocation2 + $0x38] sm:$0xff]
        %v289 = vld [vmem:[#allocation3] sm:$0xff]
        %v290 = vld [vmem:[#allocation3 + $0x8] sm:$0xff]
        %v291 = vld [vmem:[#allocation3 + $0x10] sm:$0xff]
        %v292 = vld [vmem:[#allocation3 + $0x18] sm:$0xff]
        %v293 = vld [vmem:[%s227] sm:$0xff]
        %v294 = vld [vmem:[%s227 + $0x8] sm:$0xff]
        %v295 = vld [vmem:[%s227 + $0x10] sm:$0xff]
        %v296 = vld [vmem:[%s227 + $0x18] sm:$0xff]
        %v297 = vld [vmem:[%s227 + $0x20] sm:$0xff]
        %v298 = vld [vmem:[%s227 + $0x28] sm:$0xff]
        %v299 = vld [vmem:[%s227 + $0x30] sm:$0xff]
        %v300 = vld [vmem:[%s227 + $0x38] sm:$0xff]
        %v301 = vld [vmem:[%s227 + $0x40] sm:$0xff]
        %v302 = vld [vmem:[%s227 + $0x48] sm:$0xff]
        %v303 = vld [vmem:[%s227 + $0x50] sm:$0xff]
        %v304 = vld [vmem:[%s227 + $0x58] sm:$0xff]
        %v305 = vld [vmem:[%s227 + $0x60] sm:$0xff]
        %v306 = vld [vmem:[%s227 + $0x68] sm:$0xff]
        %v307 = vld [vmem:[%s227 + $0x70] sm:$0xff]
        %v308 = vld [vmem:[%s227 + $0x78] sm:$0xff]
        %v309 = vld [vmem:[%s227 + $0x80] sm:$0xff]
        %v310 = vld [vmem:[%s227 + $0x88] sm:$0xff]
        %v311 = vld [vmem:[%s227 + $0x90] sm:$0xff]
        %v312 = vld [vmem:[%s227 + $0x98] sm:$0xff]
        %v313 = vld [vmem:[%s227 + $0xa0] sm:$0xff]
        %v314 = vld [vmem:[%s227 + $0xa8] sm:$0xff]
        %v315 = vld [vmem:[%s227 + $0xb0] sm:$0xff]
        %v316 = vld [vmem:[%s227 + $0xb8] sm:$0xff]
        %v317 = vld [vmem:[%s227 + $0xc0] sm:$0xff]
        %v318 = vld [vmem:[%s227 + $0xc8] sm:$0xff]
        %v319 = vld [vmem:[%s227 + $0xd0] sm:$0xff]
        %v320 = vld [vmem:[%s227 + $0xd8] sm:$0xff]
        %v321 = vld [vmem:[%s227 + $0xe0] sm:$0xff]
        %v322 = vld [vmem:[%s227 + $0xe8] sm:$0xff]
        %v323 = vld [vmem:[%s227 + $0xf0] sm:$0xff]
        %v324 = vld [vmem:[%s227 + $0xf8] sm:$0xff]
        %v325 = vld [vmem:[%s227 + $0x100] sm:$0xff]
        %v326 = vld [vmem:[%s227 + $0x108] sm:$0xff]
        %v327 = vld [vmem:[%s227 + $0x110] sm:$0xff]
        %v328 = vld [vmem:[%s227 + $0x118] sm:$0xff]
        %v329 = vld [vmem:[%s227 + $0x120] sm:$0xff]
        %v330 = vld [vmem:[%s227 + $0x128] sm:$0xff]
        %v331 = vld [vmem:[%s227 + $0x130] sm:$0xff]
        %v332 = vld [vmem:[%s227 + $0x138] sm:$0xff]
        %v333 = vld [vmem:[%s227 + $0x140] sm:$0xff]
        %v334 = vld [vmem:[%s227 + $0x148] sm:$0xff]
        %v335 = vld [vmem:[%s227 + $0x150] sm:$0xff]
        %v336 = vld [vmem:[%s227 + $0x158] sm:$0xff]
        %v337 = vld [vmem:[%s227 + $0x160] sm:$0xff]
        %v338 = vld [vmem:[%s227 + $0x168] sm:$0xff]
        %v339 = vld [vmem:[%s227 + $0x170] sm:$0xff]
        %v340 = vld [vmem:[%s227 + $0x178] sm:$0xff]
        %v341 = vld [vmem:[%s227 + $0x180] sm:$0xff]
        %v342 = vld [vmem:[%s227 + $0x188] sm:$0xff]
        %v343 = vld [vmem:[%s227 + $0x190] sm:$0xff]
        %v344 = vld [vmem:[%s227 + $0x198] sm:$0xff]
        %v345 = vld [vmem:[%s227 + $0x1a0] sm:$0xff]
        %v346 = vld [vmem:[%s227 + $0x1a8] sm:$0xff]
        %v347 = vld [vmem:[%s227 + $0x1b0] sm:$0xff]
        %v348 = vld [vmem:[%s227 + $0x1b8] sm:$0xff]
        %v349 = vld [vmem:[%s227 + $0x1c0] sm:$0xff]
        %v350 = vld [vmem:[%s227 + $0x1c8] sm:$0xff]
        %v351 = vld [vmem:[%s227 + $0x1d0] sm:$0xff]
        %v352 = vld [vmem:[%s227 + $0x1d8] sm:$0xff]
        %v353 = vld [vmem:[%s227 + $0x1e0] sm:$0xff]
        %v354 = vld [vmem:[%s227 + $0x1e8] sm:$0xff]
        %v355 = vld [vmem:[%s227 + $0x1f0] sm:$0xff]
        %v356 = vld [vmem:[%s227 + $0x1f8] sm:$0xff]
        %v357 = vld [vmem:[%s227 + $0x200] sm:$0xff]
        %v358 = vld [vmem:[%s227 + $0x208] sm:$0xff]
        %v359 = vld [vmem:[%s227 + $0x210] sm:$0xff]
        %v360 = vld [vmem:[%s227 + $0x218] sm:$0xff]
        %v361 = vld [vmem:[%s227 + $0x220] sm:$0xff]
        %v362 = vld [vmem:[%s227 + $0x228] sm:$0xff]
        %v363 = vld [vmem:[%s227 + $0x230] sm:$0xff]
        %v364 = vld [vmem:[%s227 + $0x238] sm:$0xff]
        %v365 = vld [vmem:[%s227 + $0x240] sm:$0xff]
        %v366 = vld [vmem:[%s227 + $0x248] sm:$0xff]
        %v367 = vld [vmem:[%s227 + $0x250] sm:$0xff]
        %v368 = vld [vmem:[%s227 + $0x258] sm:$0xff]
        %v369 = vld [vmem:[%s227 + $0x260] sm:$0xff]
        %v370 = vld [vmem:[%s227 + $0x268] sm:$0xff]
        %v371 = vld [vmem:[%s227 + $0x270] sm:$0xff]
        %v372 = vld [vmem:[%s227 + $0x278] sm:$0xff]
        %v373 = vld [vmem:[%s227 + $0x280] sm:$0xff]
        %v374 = vld [vmem:[%s227 + $0x288] sm:$0xff]
        %v375 = vld [vmem:[%s227 + $0x290] sm:$0xff]
        %v376 = vld [vmem:[%s227 + $0x298] sm:$0xff]
        %v377 = vld [vmem:[%s227 + $0x2a0] sm:$0xff]
        %v378 = vld [vmem:[%s227 + $0x2a8] sm:$0xff]
        %v379 = vld [vmem:[%s227 + $0x2b0] sm:$0xff]
        %v380 = vld [vmem:[%s227 + $0x2b8] sm:$0xff]
        %v381 = vld [vmem:[%s227 + $0x2c0] sm:$0xff]
        %v382 = vld [vmem:[%s227 + $0x2c8] sm:$0xff]
        %v383 = vld [vmem:[%s227 + $0x2d0] sm:$0xff]
        %v384 = vld [vmem:[%s227 + $0x2d8] sm:$0xff]
        %v385 = vld [vmem:[%s227 + $0x2e0] sm:$0xff]
        %v386 = vld [vmem:[%s227 + $0x2e8] sm:$0xff]
        %v387 = vld [vmem:[%s227 + $0x2f0] sm:$0xff]
        %v388 = vld [vmem:[%s227 + $0x2f8] sm:$0xff]
        %v389 = vld [vmem:[%s227 + $0x300] sm:$0xff]
        %v390 = vld [vmem:[%s227 + $0x308] sm:$0xff]
        %v391 = vld [vmem:[%s227 + $0x310] sm:$0xff]
        %v392 = vld [vmem:[%s227 + $0x318] sm:$0xff]
        %v393 = vld [vmem:[%s227 + $0x320] sm:$0xff]
        %v394 = vld [vmem:[%s227 + $0x328] sm:$0xff]
        %v395 = vld [vmem:[%s227 + $0x330] sm:$0xff]
        %v396 = vld [vmem:[%s227 + $0x338] sm:$0xff]
        %v397 = vld [vmem:[%s227 + $0x340] sm:$0xff]
        %v398 = vld [vmem:[%s227 + $0x348] sm:$0xff]
        %v399 = vld [vmem:[%s227 + $0x350] sm:$0xff]
        %v400 = vld [vmem:[%s227 + $0x358] sm:$0xff]
        %v401 = vld [vmem:[%s227 + $0x360] sm:$0xff]
        %v402 = vld [vmem:[%s227 + $0x368] sm:$0xff]
        %v403 = vld [vmem:[%s227 + $0x370] sm:$0xff]
        %v404 = vld [vmem:[%s227 + $0x378] sm:$0xff]
        %v405 = vld [vmem:[%s227 + $0x380] sm:$0xff]
        %v406 = vld [vmem:[%s227 + $0x388] sm:$0xff]
        %v407 = vld [vmem:[%s227 + $0x390] sm:$0xff]
        %v408 = vld [vmem:[%s227 + $0x398] sm:$0xff]
        %v409 = vld [vmem:[%s227 + $0x3a0] sm:$0xff]
        %v410 = vld [vmem:[%s227 + $0x3a8] sm:$0xff]
        %v411 = vld [vmem:[%s227 + $0x3b0] sm:$0xff]
        %v412 = vld [vmem:[%s227 + $0x3b8] sm:$0xff]
        %v413 = vld [vmem:[%s227 + $0x3c0] sm:$0xff]
        %v414 = vld [vmem:[%s227 + $0x3c8] sm:$0xff]
        %v415 = vld [vmem:[%s227 + $0x3d0] sm:$0xff]
        %v416 = vld [vmem:[%s227 + $0x3d8] sm:$0xff]
        %v417 = vld [vmem:[%s227 + $0x3e0] sm:$0xff]
        %v418 = vld [vmem:[%s227 + $0x3e8] sm:$0xff]
        %v419 = vld [vmem:[%s227 + $0x3f0] sm:$0xff]
        %v420 = vld [vmem:[%s227 + $0x3f8] sm:$0xff]
        %v425 = vunpack.c.l.b16 %v289
        %v426 = vunpack.c.h.b16 %v289
        %v427 = vunpack.c.l.b16 %v290
        %v428 = vunpack.c.h.b16 %v290
        %v429 = vunpack.c.l.b16 %v291
        %v430 = vunpack.c.h.b16 %v291
        %v431 = vunpack.c.l.b16 %v292
        %v432 = vunpack.c.h.b16 %v292
        %v433 = vpack.c.b16 %v429, %v425
        %v434 = vpack.c.b16 %v430, %v426
        %v435 = vpack.c.b16 %v431, %v427
        %v436 = vpack.c.b16 %v432, %v428
        %v569 = vunpack.c.l.b16 %v293
        %v570 = vunpack.c.h.b16 %v293
        %v571 = vunpack.c.l.b16 %v294
        %v572 = vunpack.c.h.b16 %v294
        %v573 = vunpack.c.l.b16 %v295
        %v574 = vunpack.c.h.b16 %v295
        %v575 = vunpack.c.l.b16 %v296
        %v576 = vunpack.c.h.b16 %v296
        %v577 = vunpack.c.l.b16 %v297
        %v578 = vunpack.c.h.b16 %v297
        %v579 = vunpack.c.l.b16 %v298
        %v580 = vunpack.c.h.b16 %v298
        %v581 = vunpack.c.l.b16 %v299
        %v582 = vunpack.c.h.b16 %v299
        %v583 = vunpack.c.l.b16 %v300
        %v584 = vunpack.c.h.b16 %v300
        %v585 = vunpack.c.l.b16 %v301
        %v586 = vunpack.c.h.b16 %v301
        %v587 = vunpack.c.l.b16 %v302
        %v588 = vunpack.c.h.b16 %v302
        %v589 = vunpack.c.l.b16 %v303
        %v590 = vunpack.c.h.b16 %v303
        %v591 = vunpack.c.l.b16 %v304
        %v592 = vunpack.c.h.b16 %v304
        %v593 = vunpack.c.l.b16 %v305
        %v594 = vunpack.c.h.b16 %v305
        %v595 = vunpack.c.l.b16 %v306
        %v596 = vunpack.c.h.b16 %v306
        %v597 = vunpack.c.l.b16 %v307
        %v598 = vunpack.c.h.b16 %v307
        %v599 = vunpack.c.l.b16 %v308
        %v600 = vunpack.c.h.b16 %v308
        %v601 = vunpack.c.l.b16 %v309
        %v602 = vunpack.c.h.b16 %v309
        %v603 = vunpack.c.l.b16 %v310
        %v604 = vunpack.c.h.b16 %v310
        %v605 = vunpack.c.l.b16 %v311
        %v606 = vunpack.c.h.b16 %v311
        %v607 = vunpack.c.l.b16 %v312
        %v608 = vunpack.c.h.b16 %v312
        %v609 = vunpack.c.l.b16 %v313
        %v610 = vunpack.c.h.b16 %v313
        %v611 = vunpack.c.l.b16 %v314
        %v612 = vunpack.c.h.b16 %v314
        %v613 = vunpack.c.l.b16 %v315
        %v614 = vunpack.c.h.b16 %v315
        %v615 = vunpack.c.l.b16 %v316
        %v616 = vunpack.c.h.b16 %v316
        %v617 = vunpack.c.l.b16 %v317
        %v618 = vunpack.c.h.b16 %v317
        %v619 = vunpack.c.l.b16 %v318
        %v620 = vunpack.c.h.b16 %v318
        %v621 = vunpack.c.l.b16 %v319
        %v622 = vunpack.c.h.b16 %v319
        %v623 = vunpack.c.l.b16 %v320
        %v624 = vunpack.c.h.b16 %v320
        %v625 = vunpack.c.l.b16 %v321
        %v626 = vunpack.c.h.b16 %v321
        %v627 = vunpack.c.l.b16 %v322
        %v628 = vunpack.c.h.b16 %v322
        %v629 = vunpack.c.l.b16 %v323
        %v630 = vunpack.c.h.b16 %v323
        %v631 = vunpack.c.l.b16 %v324
        %v632 = vunpack.c.h.b16 %v324
        %v633 = vunpack.c.l.b16 %v325
        %v634 = vunpack.c.h.b16 %v325
        %v635 = vunpack.c.l.b16 %v326
        %v636 = vunpack.c.h.b16 %v326
        %v637 = vunpack.c.l.b16 %v327
        %v638 = vunpack.c.h.b16 %v327
        %v639 = vunpack.c.l.b16 %v328
        %v640 = vunpack.c.h.b16 %v328
        %v641 = vunpack.c.l.b16 %v329
        %v642 = vunpack.c.h.b16 %v329
        %v643 = vunpack.c.l.b16 %v330
        %v644 = vunpack.c.h.b16 %v330
        %v645 = vunpack.c.l.b16 %v331
        %v646 = vunpack.c.h.b16 %v331
        %v647 = vunpack.c.l.b16 %v332
        %v648 = vunpack.c.h.b16 %v332
        %v649 = vunpack.c.l.b16 %v333
        %v650 = vunpack.c.h.b16 %v333
        %v651 = vunpack.c.l.b16 %v334
        %v652 = vunpack.c.h.b16 %v334
        %v653 = vunpack.c.l.b16 %v335
        %v654 = vunpack.c.h.b16 %v335
        %v655 = vunpack.c.l.b16 %v336
        %v656 = vunpack.c.h.b16 %v336
        %v657 = vunpack.c.l.b16 %v337
        %v658 = vunpack.c.h.b16 %v337
        %v659 = vunpack.c.l.b16 %v338
        %v660 = vunpack.c.h.b16 %v338
        %v661 = vunpack.c.l.b16 %v339
        %v662 = vunpack.c.h.b16 %v339
        %v663 = vunpack.c.l.b16 %v340
        %v664 = vunpack.c.h.b16 %v340
        %v665 = vunpack.c.l.b16 %v341
        %v666 = vunpack.c.h.b16 %v341
        %v667 = vunpack.c.l.b16 %v342
        %v668 = vunpack.c.h.b16 %v342
        %v669 = vunpack.c.l.b16 %v343
        %v670 = vunpack.c.h.b16 %v343
        %v671 = vunpack.c.l.b16 %v344
        %v672 = vunpack.c.h.b16 %v344
        %v673 = vunpack.c.l.b16 %v345
        %v674 = vunpack.c.h.b16 %v345
        %v675 = vunpack.c.l.b16 %v346
        %v676 = vunpack.c.h.b16 %v346
        %v677 = vunpack.c.l.b16 %v347
        %v678 = vunpack.c.h.b16 %v347
        %v679 = vunpack.c.l.b16 %v348
        %v680 = vunpack.c.h.b16 %v348
        %v681 = vunpack.c.l.b16 %v349
        %v682 = vunpack.c.h.b16 %v349
        %v683 = vunpack.c.l.b16 %v350
        %v684 = vunpack.c.h.b16 %v350
        %v685 = vunpack.c.l.b16 %v351
        %v686 = vunpack.c.h.b16 %v351
        %v687 = vunpack.c.l.b16 %v352
        %v688 = vunpack.c.h.b16 %v352
        %v689 = vunpack.c.l.b16 %v353
        %v690 = vunpack.c.h.b16 %v353
        %v691 = vunpack.c.l.b16 %v354
        %v692 = vunpack.c.h.b16 %v354
        %v693 = vunpack.c.l.b16 %v355
        %v694 = vunpack.c.h.b16 %v355
        %v695 = vunpack.c.l.b16 %v356
        %v696 = vunpack.c.h.b16 %v356
        %v697 = vunpack.c.l.b16 %v357
        %v698 = vunpack.c.h.b16 %v357
        %v699 = vunpack.c.l.b16 %v358
        %v700 = vunpack.c.h.b16 %v358
        %v701 = vunpack.c.l.b16 %v359
        %v702 = vunpack.c.h.b16 %v359
        %v703 = vunpack.c.l.b16 %v360
        %v704 = vunpack.c.h.b16 %v360
        %v705 = vunpack.c.l.b16 %v361
        %v706 = vunpack.c.h.b16 %v361
        %v707 = vunpack.c.l.b16 %v362
        %v708 = vunpack.c.h.b16 %v362
        %v709 = vunpack.c.l.b16 %v363
        %v710 = vunpack.c.h.b16 %v363
        %v711 = vunpack.c.l.b16 %v364
        %v712 = vunpack.c.h.b16 %v364
        %v713 = vunpack.c.l.b16 %v365
        %v714 = vunpack.c.h.b16 %v365
        %v715 = vunpack.c.l.b16 %v366
        %v716 = vunpack.c.h.b16 %v366
        %v717 = vunpack.c.l.b16 %v367
        %v718 = vunpack.c.h.b16 %v367
        %v719 = vunpack.c.l.b16 %v368
        %v720 = vunpack.c.h.b16 %v368
        %v721 = vunpack.c.l.b16 %v369
        %v722 = vunpack.c.h.b16 %v369
        %v723 = vunpack.c.l.b16 %v370
        %v724 = vunpack.c.h.b16 %v370
        %v725 = vunpack.c.l.b16 %v371
        %v726 = vunpack.c.h.b16 %v371
        %v727 = vunpack.c.l.b16 %v372
        %v728 = vunpack.c.h.b16 %v372
        %v729 = vunpack.c.l.b16 %v373
        %v730 = vunpack.c.h.b16 %v373
        %v731 = vunpack.c.l.b16 %v374
        %v732 = vunpack.c.h.b16 %v374
        %v733 = vunpack.c.l.b16 %v375
        %v734 = vunpack.c.h.b16 %v375
        %v735 = vunpack.c.l.b16 %v376
        %v736 = vunpack.c.h.b16 %v376
        %v737 = vunpack.c.l.b16 %v377
        %v738 = vunpack.c.h.b16 %v377
        %v739 = vunpack.c.l.b16 %v378
        %v740 = vunpack.c.h.b16 %v378
        %v741 = vunpack.c.l.b16 %v379
        %v742 = vunpack.c.h.b16 %v379
        %v743 = vunpack.c.l.b16 %v380
        %v744 = vunpack.c.h.b16 %v380
        %v745 = vunpack.c.l.b16 %v381
        %v746 = vunpack.c.h.b16 %v381
        %v747 = vunpack.c.l.b16 %v382
        %v748 = vunpack.c.h.b16 %v382
        %v749 = vunpack.c.l.b16 %v383
        %v750 = vunpack.c.h.b16 %v383
        %v751 = vunpack.c.l.b16 %v384
        %v752 = vunpack.c.h.b16 %v384
        %v753 = vunpack.c.l.b16 %v385
        %v754 = vunpack.c.h.b16 %v385
        %v755 = vunpack.c.l.b16 %v386
        %v756 = vunpack.c.h.b16 %v386
        %v757 = vunpack.c.l.b16 %v387
        %v758 = vunpack.c.h.b16 %v387
        %v759 = vunpack.c.l.b16 %v388
        %v760 = vunpack.c.h.b16 %v388
        %v761 = vunpack.c.l.b16 %v389
        %v762 = vunpack.c.h.b16 %v389
        %v763 = vunpack.c.l.b16 %v390
        %v764 = vunpack.c.h.b16 %v390
        %v765 = vunpack.c.l.b16 %v391
        %v766 = vunpack.c.h.b16 %v391
        %v767 = vunpack.c.l.b16 %v392
        %v768 = vunpack.c.h.b16 %v392
        %v769 = vunpack.c.l.b16 %v393
        %v770 = vunpack.c.h.b16 %v393
        %v771 = vunpack.c.l.b16 %v394
        %v772 = vunpack.c.h.b16 %v394
        %v773 = vunpack.c.l.b16 %v395
        %v774 = vunpack.c.h.b16 %v395
        %v775 = vunpack.c.l.b16 %v396
        %v776 = vunpack.c.h.b16 %v396
        %v777 = vunpack.c.l.b16 %v397
        %v778 = vunpack.c.h.b16 %v397
        %v779 = vunpack.c.l.b16 %v398
        %v780 = vunpack.c.h.b16 %v398
        %v781 = vunpack.c.l.b16 %v399
        %v782 = vunpack.c.h.b16 %v399
        %v783 = vunpack.c.l.b16 %v400
        %v784 = vunpack.c.h.b16 %v400
        %v785 = vunpack.c.l.b16 %v401
        %v786 = vunpack.c.h.b16 %v401
        %v787 = vunpack.c.l.b16 %v402
        %v788 = vunpack.c.h.b16 %v402
        %v789 = vunpack.c.l.b16 %v403
        %v790 = vunpack.c.h.b16 %v403
        %v791 = vunpack.c.l.b16 %v404
        %v792 = vunpack.c.h.b16 %v404
        %v793 = vunpack.c.l.b16 %v405
        %v794 = vunpack.c.h.b16 %v405
        %v795 = vunpack.c.l.b16 %v406
        %v796 = vunpack.c.h.b16 %v406
        %v797 = vunpack.c.l.b16 %v407
        %v798 = vunpack.c.h.b16 %v407
        %v799 = vunpack.c.l.b16 %v408
        %v800 = vunpack.c.h.b16 %v408
        %v801 = vunpack.c.l.b16 %v409
        %v802 = vunpack.c.h.b16 %v409
        %v803 = vunpack.c.l.b16 %v410
        %v804 = vunpack.c.h.b16 %v410
        %v805 = vunpack.c.l.b16 %v411
        %v806 = vunpack.c.h.b16 %v411
        %v807 = vunpack.c.l.b16 %v412
        %v808 = vunpack.c.h.b16 %v412
        %v809 = vunpack.c.l.b16 %v413
        %v810 = vunpack.c.h.b16 %v413
        %v811 = vunpack.c.l.b16 %v414
        %v812 = vunpack.c.h.b16 %v414
        %v813 = vunpack.c.l.b16 %v415
        %v814 = vunpack.c.h.b16 %v415
        %v815 = vunpack.c.l.b16 %v416
        %v816 = vunpack.c.h.b16 %v416
        %v817 = vunpack.c.l.b16 %v417
        %v818 = vunpack.c.h.b16 %v417
        %v819 = vunpack.c.l.b16 %v418
        %v820 = vunpack.c.h.b16 %v418
        %v821 = vunpack.c.l.b16 %v419
        %v822 = vunpack.c.h.b16 %v419
        %v823 = vunpack.c.l.b16 %v420
        %v824 = vunpack.c.h.b16 %v420
        %v825 = vpack.c.b16 %v573, %v569
        %v826 = vpack.c.b16 %v574, %v570
        %v827 = vpack.c.b16 %v575, %v571
        %v828 = vpack.c.b16 %v576, %v572
        %v829 = vpack.c.b16 %v581, %v577
        %v830 = vpack.c.b16 %v582, %v578
        %v831 = vpack.c.b16 %v583, %v579
        %v832 = vpack.c.b16 %v584, %v580
        %v833 = vpack.c.b16 %v589, %v585
        %v834 = vpack.c.b16 %v590, %v586
        %v835 = vpack.c.b16 %v591, %v587
        %v836 = vpack.c.b16 %v592, %v588
        %v837 = vpack.c.b16 %v597, %v593
        %v838 = vpack.c.b16 %v598, %v594
        %v839 = vpack.c.b16 %v599, %v595
        %v840 = vpack.c.b16 %v600, %v596
        %v841 = vpack.c.b16 %v605, %v601
        %v842 = vpack.c.b16 %v606, %v602
        %v843 = vpack.c.b16 %v607, %v603
        %v844 = vpack.c.b16 %v608, %v604
        %v845 = vpack.c.b16 %v613, %v609
        %v846 = vpack.c.b16 %v614, %v610
        %v847 = vpack.c.b16 %v615, %v611
        %v848 = vpack.c.b16 %v616, %v612
        %v849 = vpack.c.b16 %v621, %v617
        %v850 = vpack.c.b16 %v622, %v618
        %v851 = vpack.c.b16 %v623, %v619
        %v852 = vpack.c.b16 %v624, %v620
        %v853 = vpack.c.b16 %v629, %v625
        %v854 = vpack.c.b16 %v630, %v626
        %v855 = vpack.c.b16 %v631, %v627
        %v856 = vpack.c.b16 %v632, %v628
        %v857 = vpack.c.b16 %v637, %v633
        %v858 = vpack.c.b16 %v638, %v634
        %v859 = vpack.c.b16 %v639, %v635
        %v860 = vpack.c.b16 %v640, %v636
        %v861 = vpack.c.b16 %v645, %v641
        %v862 = vpack.c.b16 %v646, %v642
        %v863 = vpack.c.b16 %v647, %v643
        %v864 = vpack.c.b16 %v648, %v644
        %v865 = vpack.c.b16 %v653, %v649
        %v866 = vpack.c.b16 %v654, %v650
        %v867 = vpack.c.b16 %v655, %v651
        %v868 = vpack.c.b16 %v656, %v652
        %v869 = vpack.c.b16 %v661, %v657
        %v870 = vpack.c.b16 %v662, %v658
        %v871 = vpack.c.b16 %v663, %v659
        %v872 = vpack.c.b16 %v664, %v660
        %v873 = vpack.c.b16 %v669, %v665
        %v874 = vpack.c.b16 %v670, %v666
        %v875 = vpack.c.b16 %v671, %v667
        %v876 = vpack.c.b16 %v672, %v668
        %v877 = vpack.c.b16 %v677, %v673
        %v878 = vpack.c.b16 %v678, %v674
        %v879 = vpack.c.b16 %v679, %v675
        %v880 = vpack.c.b16 %v680, %v676
        %v881 = vpack.c.b16 %v685, %v681
        %v882 = vpack.c.b16 %v686, %v682
        %v883 = vpack.c.b16 %v687, %v683
        %v884 = vpack.c.b16 %v688, %v684
        %v885 = vpack.c.b16 %v693, %v689
        %v886 = vpack.c.b16 %v694, %v690
        %v887 = vpack.c.b16 %v695, %v691
        %v888 = vpack.c.b16 %v696, %v692
        %v889 = vpack.c.b16 %v701, %v697
        %v890 = vpack.c.b16 %v702, %v698
        %v891 = vpack.c.b16 %v703, %v699
        %v892 = vpack.c.b16 %v704, %v700
        %v893 = vpack.c.b16 %v709, %v705
        %v894 = vpack.c.b16 %v710, %v706
        %v895 = vpack.c.b16 %v711, %v707
        %v896 = vpack.c.b16 %v712, %v708
        %v897 = vpack.c.b16 %v717, %v713
        %v898 = vpack.c.b16 %v718, %v714
        %v899 = vpack.c.b16 %v719, %v715
        %v900 = vpack.c.b16 %v720, %v716
        %v901 = vpack.c.b16 %v725, %v721
        %v902 = vpack.c.b16 %v726, %v722
        %v903 = vpack.c.b16 %v727, %v723
        %v904 = vpack.c.b16 %v728, %v724
        %v905 = vpack.c.b16 %v733, %v729
        %v906 = vpack.c.b16 %v734, %v730
        %v907 = vpack.c.b16 %v735, %v731
        %v908 = vpack.c.b16 %v736, %v732
        %v909 = vpack.c.b16 %v741, %v737
        %v910 = vpack.c.b16 %v742, %v738
        %v911 = vpack.c.b16 %v743, %v739
        %v912 = vpack.c.b16 %v744, %v740
        %v913 = vpack.c.b16 %v749, %v745
        %v914 = vpack.c.b16 %v750, %v746
        %v915 = vpack.c.b16 %v751, %v747
        %v916 = vpack.c.b16 %v752, %v748
        %v917 = vpack.c.b16 %v757, %v753
        %v918 = vpack.c.b16 %v758, %v754
        %v919 = vpack.c.b16 %v759, %v755
        %v920 = vpack.c.b16 %v760, %v756
        %v921 = vpack.c.b16 %v765, %v761
        %v922 = vpack.c.b16 %v766, %v762
        %v923 = vpack.c.b16 %v767, %v763
        %v924 = vpack.c.b16 %v768, %v764
        %v925 = vpack.c.b16 %v773, %v769
        %v926 = vpack.c.b16 %v774, %v770
        %v927 = vpack.c.b16 %v775, %v771
        %v928 = vpack.c.b16 %v776, %v772
        %v929 = vpack.c.b16 %v781, %v777
        %v930 = vpack.c.b16 %v782, %v778
        %v931 = vpack.c.b16 %v783, %v779
        %v932 = vpack.c.b16 %v784, %v780
        %v933 = vpack.c.b16 %v789, %v785
        %v934 = vpack.c.b16 %v790, %v786
        %v935 = vpack.c.b16 %v791, %v787
        %v936 = vpack.c.b16 %v792, %v788
        %v937 = vpack.c.b16 %v797, %v793
        %v938 = vpack.c.b16 %v798, %v794
        %v939 = vpack.c.b16 %v799, %v795
        %v940 = vpack.c.b16 %v800, %v796
        %v941 = vpack.c.b16 %v805, %v801
        %v942 = vpack.c.b16 %v806, %v802
        %v943 = vpack.c.b16 %v807, %v803
        %v944 = vpack.c.b16 %v808, %v804
        %v945 = vpack.c.b16 %v813, %v809
        %v946 = vpack.c.b16 %v814, %v810
        %v947 = vpack.c.b16 %v815, %v811
        %v948 = vpack.c.b16 %v816, %v812
        %v949 = vpack.c.b16 %v821, %v817
        %v950 = vpack.c.b16 %v822, %v818
        %v951 = vpack.c.b16 %v823, %v819
        %v952 = vpack.c.b16 %v824, %v820
        %1081 = vmatprep.subr.bf16.mxu0 %v826
        %1082 = vmatpush1.bf16.msra.mxu0 %v825
        %1083 = vmatprep.subr.bf16.mxu0 %v830
        %1084 = vmatpush1.bf16.msra.mxu0 %v829
        %1085 = vmatprep.subr.bf16.mxu0 %v834
        %1086 = vmatpush1.bf16.msra.mxu0 %v833
        %1087 = vmatprep.subr.bf16.mxu0 %v838
        %1088 = vmatpush1.bf16.msra.mxu0 %v837
        %1089 = vmatprep.subr.bf16.mxu0 %v842
        %1090 = vmatpush1.bf16.msra.mxu0 %v841
        %1091 = vmatprep.subr.bf16.mxu0 %v846
        %1092 = vmatpush1.bf16.msra.mxu0 %v845
        %1093 = vmatprep.subr.bf16.mxu0 %v850
        %1094 = vmatpush1.bf16.msra.mxu0 %v849
        %1095 = vmatprep.subr.bf16.mxu0 %v854
        %1096 = vmatpush1.bf16.msra.mxu0 %v853
        %1097 = vmatprep.subr.bf16.mxu0 %v858
        %1098 = vmatpush1.bf16.msra.mxu0 %v857
        %1099 = vmatprep.subr.bf16.mxu0 %v862
        %1100 = vmatpush1.bf16.msra.mxu0 %v861
        %1101 = vmatprep.subr.bf16.mxu0 %v866
        %1102 = vmatpush1.bf16.msra.mxu0 %v865
        %1103 = vmatprep.subr.bf16.mxu0 %v870
        %1104 = vmatpush1.bf16.msra.mxu0 %v869
        %1105 = vmatprep.subr.bf16.mxu0 %v874
        %1106 = vmatpush1.bf16.msra.mxu0 %v873
        %1107 = vmatprep.subr.bf16.mxu0 %v878
        %1108 = vmatpush1.bf16.msra.mxu0 %v877
        %1109 = vmatprep.subr.bf16.mxu0 %v882
        %1110 = vmatpush1.bf16.msra.mxu0 %v881
        %1111 = vmatprep.subr.bf16.mxu0 %v886
        %1112 = vmatpush1.bf16.msra.mxu0 %v885
        %1113 = vmatprep.mubr.bf16.mxu0 %v434
        %1114 = vmatmul.mubr.bf16.gmra.mrb[0].mxu0 %v433
        %v1115 = vpop.f32.mrb[0].mxu0
        %v1116 = vadd.f32 0.0, %v1115
        %v1117 = vpop.f32.mrb[0].mxu0
        %v1118 = vadd.f32 0.0, %v1117
        %v1119 = vpop.f32.mrb[0].mxu0
        %v1120 = vadd.f32 0.0, %v1119
        %v1121 = vpop.f32.mrb[0].mxu0
        %v1122 = vadd.f32 0.0, %v1121
        %1123 = vdwg.mxu0
        %1124 = vmatprep.subr.bf16.mxu0 %v890
        %1125 = vmatpush1.bf16.msra.mxu0 %v889
        %1126 = vmatprep.subr.bf16.mxu0 %v894
        %1127 = vmatpush1.bf16.msra.mxu0 %v893
        %1128 = vmatprep.subr.bf16.mxu0 %v898
        %1129 = vmatpush1.bf16.msra.mxu0 %v897
        %1130 = vmatprep.subr.bf16.mxu0 %v902
        %1131 = vmatpush1.bf16.msra.mxu0 %v901
        %1132 = vmatprep.subr.bf16.mxu0 %v906
        %1133 = vmatpush1.bf16.msra.mxu0 %v905
        %1134 = vmatprep.subr.bf16.mxu0 %v910
        %1135 = vmatpush1.bf16.msra.mxu0 %v909
        %1136 = vmatprep.subr.bf16.mxu0 %v914
        %1137 = vmatpush1.bf16.msra.mxu0 %v913
        %1138 = vmatprep.subr.bf16.mxu0 %v918
        %1139 = vmatpush1.bf16.msra.mxu0 %v917
        %1140 = vmatprep.subr.bf16.mxu0 %v922
        %1141 = vmatpush1.bf16.msra.mxu0 %v921
        %1142 = vmatprep.subr.bf16.mxu0 %v926
        %1143 = vmatpush1.bf16.msra.mxu0 %v925
        %1144 = vmatprep.subr.bf16.mxu0 %v930
        %1145 = vmatpush1.bf16.msra.mxu0 %v929
        %1146 = vmatprep.subr.bf16.mxu0 %v934
        %1147 = vmatpush1.bf16.msra.mxu0 %v933
        %1148 = vmatprep.subr.bf16.mxu0 %v938
        %1149 = vmatpush1.bf16.msra.mxu0 %v937
        %1150 = vmatprep.subr.bf16.mxu0 %v942
        %1151 = vmatpush1.bf16.msra.mxu0 %v941
        %1152 = vmatprep.subr.bf16.mxu0 %v946
        %1153 = vmatpush1.bf16.msra.mxu0 %v945
        %1154 = vmatprep.subr.bf16.mxu0 %v950
        %1155 = vmatpush1.bf16.msra.mxu0 %v949
        %1156 = vmatprep.mubr.bf16.mxu0 %v436
        %1157 = vmatmul.mubr.bf16.gmra.mrb[0].mxu0 %v435
        %v1158 = vpop.f32.mrb[0].mxu0
        %v1159 = vadd.f32 %v1116, %v1158
        %v1160 = vpop.f32.mrb[0].mxu0
        %v1161 = vadd.f32 %v1118, %v1160
        %v1162 = vpop.f32.mrb[0].mxu0
        %v1163 = vadd.f32 %v1120, %v1162
        %v1164 = vpop.f32.mrb[0].mxu0
        %v1165 = vadd.f32 %v1122, %v1164
        %1166 = vdwg.mxu0
        %1167 = vmatprep.subr.bf16.mxu0 %v828
        %1168 = vmatpush1.bf16.msra.mxu0 %v827
        %1169 = vmatprep.subr.bf16.mxu0 %v832
        %1170 = vmatpush1.bf16.msra.mxu0 %v831
        %1171 = vmatprep.subr.bf16.mxu0 %v836
        %1172 = vmatpush1.bf16.msra.mxu0 %v835
        %1173 = vmatprep.subr.bf16.mxu0 %v840
        %1174 = vmatpush1.bf16.msra.mxu0 %v839
        %1175 = vmatprep.subr.bf16.mxu0 %v844
        %1176 = vmatpush1.bf16.msra.mxu0 %v843
        %1177 = vmatprep.subr.bf16.mxu0 %v848
        %1178 = vmatpush1.bf16.msra.mxu0 %v847
        %1179 = vmatprep.subr.bf16.mxu0 %v852
        %1180 = vmatpush1.bf16.msra.mxu0 %v851
        %1181 = vmatprep.subr.bf16.mxu0 %v856
        %1182 = vmatpush1.bf16.msra.mxu0 %v855
        %1183 = vmatprep.subr.bf16.mxu0 %v860
        %1184 = vmatpush1.bf16.msra.mxu0 %v859
        %1185 = vmatprep.subr.bf16.mxu0 %v864
        %1186 = vmatpush1.bf16.msra.mxu0 %v863
        %1187 = vmatprep.subr.bf16.mxu0 %v868
        %1188 = vmatpush1.bf16.msra.mxu0 %v867
        %1189 = vmatprep.subr.bf16.mxu0 %v872
        %1190 = vmatpush1.bf16.msra.mxu0 %v871
        %1191 = vmatprep.subr.bf16.mxu0 %v876
        %1192 = vmatpush1.bf16.msra.mxu0 %v875
        %1193 = vmatprep.subr.bf16.mxu0 %v880
        %1194 = vmatpush1.bf16.msra.mxu0 %v879
        %1195 = vmatprep.subr.bf16.mxu0 %v884
        %1196 = vmatpush1.bf16.msra.mxu0 %v883
        %1197 = vmatprep.subr.bf16.mxu0 %v888
        %1198 = vmatpush1.bf16.msra.mxu0 %v887
        %1199 = vmatprep.mubr.bf16.mxu0 %v434
        %1200 = vmatmul.mubr.bf16.gmra.mrb[0].mxu0 %v433
        %v1201 = vpop.f32.mrb[0].mxu0
        %v1202 = vadd.f32 0.0, %v1201
        %v1203 = vpop.f32.mrb[0].mxu0
        %v1204 = vadd.f32 0.0, %v1203
        %v1205 = vpop.f32.mrb[0].mxu0
        %v1206 = vadd.f32 0.0, %v1205
        %v1207 = vpop.f32.mrb[0].mxu0
        %v1208 = vadd.f32 0.0, %v1207
        %1209 = vdwg.mxu0
        %1210 = vmatprep.subr.bf16.mxu0 %v892
        %1211 = vmatpush1.bf16.msra.mxu0 %v891
        %1212 = vmatprep.subr.bf16.mxu0 %v896
        %1213 = vmatpush1.bf16.msra.mxu0 %v895
        %1214 = vmatprep.subr.bf16.mxu0 %v900
        %1215 = vmatpush1.bf16.msra.mxu0 %v899
        %1216 = vmatprep.subr.bf16.mxu0 %v904
        %1217 = vmatpush1.bf16.msra.mxu0 %v903
        %1218 = vmatprep.subr.bf16.mxu0 %v908
        %1219 = vmatpush1.bf16.msra.mxu0 %v907
        %1220 = vmatprep.subr.bf16.mxu0 %v912
        %1221 = vmatpush1.bf16.msra.mxu0 %v911
        %1222 = vmatprep.subr.bf16.mxu0 %v916
        %1223 = vmatpush1.bf16.msra.mxu0 %v915
        %1224 = vmatprep.subr.bf16.mxu0 %v920
        %1225 = vmatpush1.bf16.msra.mxu0 %v919
        %1226 = vmatprep.subr.bf16.mxu0 %v924
        %1227 = vmatpush1.bf16.msra.mxu0 %v923
        %1228 = vmatprep.subr.bf16.mxu0 %v928
        %1229 = vmatpush1.bf16.msra.mxu0 %v927
        %1230 = vmatprep.subr.bf16.mxu0 %v932
        %1231 = vmatpush1.bf16.msra.mxu0 %v931
        %1232 = vmatprep.subr.bf16.mxu0 %v936
        %1233 = vmatpush1.bf16.msra.mxu0 %v935
        %1234 = vmatprep.subr.bf16.mxu0 %v940
        %1235 = vmatpush1.bf16.msra.mxu0 %v939
        %1236 = vmatprep.subr.bf16.mxu0 %v944
        %1237 = vmatpush1.bf16.msra.mxu0 %v943
        %1238 = vmatprep.subr.bf16.mxu0 %v948
        %1239 = vmatpush1.bf16.msra.mxu0 %v947
        %1240 = vmatprep.subr.bf16.mxu0 %v952
        %1241 = vmatpush1.bf16.msra.mxu0 %v951
        %1242 = vmatprep.mubr.bf16.mxu0 %v436
        %1243 = vmatmul.mubr.bf16.gmra.mrb[0].mxu0 %v435
        %v1244 = vpop.f32.mrb[0].mxu0
        %v1245 = vadd.f32 %v1202, %v1244
        %v1246 = vpop.f32.mrb[0].mxu0
        %v1247 = vadd.f32 %v1204, %v1246
        %v1248 = vpop.f32.mrb[0].mxu0
        %v1249 = vadd.f32 %v1206, %v1248
        %v1250 = vpop.f32.mrb[0].mxu0
        %v1251 = vadd.f32 %v1208, %v1250
        %1252 = vdwg.mxu0
        %v1253 = vadd.f32 %v281, %v1159
        %v1254 = vadd.f32 %v282, %v1161
        %v1255 = vadd.f32 %v283, %v1245
        %v1256 = vadd.f32 %v284, %v1247
        %v1257 = vadd.f32 %v285, %v1163
        %v1258 = vadd.f32 %v286, %v1165
        %v1259 = vadd.f32 %v287, %v1249
        %v1260 = vadd.f32 %v288, %v1251
        %1261 = vst [vmem:[#allocation2] sm:$0xff] %v1253
        %1262 = vst [vmem:[#allocation2 + $0x8] sm:$0xff] %v1254
        %1263 = vst [vmem:[#allocation2 + $0x10] sm:$0xff] %v1255
        %1264 = vst [vmem:[#allocation2 + $0x18] sm:$0xff] %v1256
        %1265 = vst [vmem:[#allocation2 + $0x20] sm:$0xff] %v1257
        %1266 = vst [vmem:[#allocation2 + $0x28] sm:$0xff] %v1258
        %1267 = vst [vmem:[#allocation2 + $0x30] sm:$0xff] %v1259
        %1268 = vst [vmem:[#allocation2 + $0x38] sm:$0xff] %v1260
        // Predicated region
        $region49: #{tpu_custom_call.1} parent=31 // pred_check
          %p1269 = pneg %p269
        $region50: #{tpu_custom_call.1} parent=31 // pred_check_branch
          %1271 = sbr.rel (%p1269) target = $region52
        $region51: #{tpu_custom_call.1} parent=31 // pred_region
          %v1272 = vld [vmem:[#allocation2] sm:$0xff]
          %v1273 = vld [vmem:[#allocation2 + $0x8] sm:$0xff]
          %v1274 = vld [vmem:[#allocation2 + $0x10] sm:$0xff]
          %v1275 = vld [vmem:[#allocation2 + $0x18] sm:$0xff]
          %v1276 = vld [vmem:[#allocation2 + $0x20] sm:$0xff]
          %v1277 = vld [vmem:[#allocation2 + $0x28] sm:$0xff]
          %v1278 = vld [vmem:[#allocation2 + $0x30] sm:$0xff]
          %v1279 = vld [vmem:[#allocation2 + $0x38] sm:$0xff]
          %v1280 = vld [vmem:[%s236] sm:$0xf]
          %v1282 = vlaneseq
          %v1283 = vshrl.u32 %v1282, 7
          %v1284 = vsub.s32 0, %v1283
          %v1285 = vrot.slane %v1280, %v1284
          %v1286 = vlaneseq
          %v1287 = vshrl.u32 %v1286, 7
          %v1288 = vsub.s32 1, %v1287
          %v1289 = vrot.slane %v1280, %v1288
          %v1290 = vlaneseq
          %v1291 = vshrl.u32 %v1290, 7
          %v1292 = vsub.s32 2, %v1291
          %v1293 = vrot.slane %v1280, %v1292
          %v1294 = vlaneseq
          %v1295 = vshrl.u32 %v1294, 7
          %v1296 = vsub.s32 3, %v1295
          %v1297 = vrot.slane %v1280, %v1296
          %v1302 = vadd.f32 %v1272, %v1285
          %v1303 = vadd.f32 %v1273, %v1289
          %v1304 = vadd.f32 %v1274, %v1293
          %v1305 = vadd.f32 %v1275, %v1297
          %v1306 = vadd.f32 %v1276, %v1285
          %v1307 = vadd.f32 %v1277, %v1289
          %v1308 = vadd.f32 %v1278, %v1293
          %v1309 = vadd.f32 %v1279, %v1297
          %v1310 = vmax.f32 %v1302, 0.0
          %v1311 = vmax.f32 %v1303, 0.0
          %v1312 = vmax.f32 %v1304, 0.0
          %v1313 = vmax.f32 %v1305, 0.0
          %v1314 = vmax.f32 %v1306, 0.0
          %v1315 = vmax.f32 %v1307, 0.0
          %v1316 = vmax.f32 %v1308, 0.0
          %v1317 = vmax.f32 %v1309, 0.0
          %v1318 = vpack.c.bf16 %v1314, %v1310
          %v1319 = vpack.c.bf16 %v1315, %v1311
          %v1320 = vpack.c.bf16 %v1316, %v1312
          %v1321 = vpack.c.bf16 %v1317, %v1313
          %v1326 = vunpack.c.l.b16 %v1318
          %v1327 = vunpack.c.l.b16 %v1319
          %v1328 = vunpack.c.l.b16 %v1320
          %v1329 = vunpack.c.l.b16 %v1321
          %v1330 = vunpack.c.h.b16 %v1318
          %v1331 = vunpack.c.h.b16 %v1319
          %v1332 = vunpack.c.h.b16 %v1320
          %v1333 = vunpack.c.h.b16 %v1321
          %v1334 = vpack.c.b16 %v1327, %v1326
          %v1335 = vpack.c.b16 %v1329, %v1328
          %v1336 = vpack.c.b16 %v1331, %v1330
          %v1337 = vpack.c.b16 %v1333, %v1332
          %1342 = vst [vmem:[%s263] sm:$0xff] %v1334
          %1343 = vst [vmem:[%s263 + $0x8] sm:$0xff] %v1335
          %1344 = vst [vmem:[%s263 + $0x10] sm:$0xff] %v1336
          %1345 = vst [vmem:[%s263 + $0x18] sm:$0xff] %v1337
        $region52: #{tpu_custom_call.1} parent=31 // pred_fallthru
          _
        %s1346 = sand.u32 %s121, 1
        %s1347 = scalar_lea.sflag [#allocation5], %s1346
        %s1348 = sand.u32 %s121, 1
        %s1349 = smul.addr %s1348, 32
        %s1350 = scalar_lea.vmem [#allocation9], %s1349
        // Predicated region
        $region53: #{tpu_custom_call.1} parent=31 // pred_check
          %p1351 = pneg %p131
        $region54: #{tpu_custom_call.1} parent=31 // pred_check_branch
          %1353 = sbr.rel (%p1351) target = $region56
        $region55: #{tpu_custom_call.1} parent=31 // pred_region
          %s1354 = smul.u32 4, %s25
          %s1356 = ssub.s32 512, 512
          %1357 = vsyncadd %s1347, %s1356
          %s1358 = smul.addr %s1354, 64
          %s1359 = scalar_lea.hbm %s3, %s1358
          %s1360 = sshll.u32 %s1350, 4
          %s1361 = int_to_ptr.vmem [resolvable:$true] %s1360
          %1366 = dma.vmem_to_hbm [thread:$0]  %s1361, 512, %s1359, %s1347, 256, 2048, 16
        $region56: #{tpu_custom_call.1} parent=31 // pred_fallthru
          _
      $region32: #{tpu_custom_call.1} parent=5 // pred_fallthru
        _
      %p1367 = scmp.le.s32.totalorder 2, %s16
      // Predicated region
      $region57: #{tpu_custom_call.1} parent=5 // pred_check
        %p1368 = pneg %p1367
      $region58: #{tpu_custom_call.1} parent=5 // pred_check_branch
        %1370 = sbr.rel (%p1368) target = $region60
      $region59: #{tpu_custom_call.1} parent=5 // pred_region
        %s1371 = ssub.s32 %s16, 2
        // Predicated region
        $region61: #{tpu_custom_call.1} parent=59 // pred_check
          %p1372 = pneg %p137
        $region62: #{tpu_custom_call.1} parent=59 // pred_check_branch
          %1374 = sbr.rel (%p1372) target = $region64
        $region63: #{tpu_custom_call.1} parent=59 // pred_region
          %s1375 = sand.u32 %s122, 1
          %s1376 = scalar_lea.sflag [#allocation5], %s1375
          %s1377 = sand.u32 %s122, 1
          %s1378 = smul.addr %s1377, 32
          %s1379 = scalar_lea.vmem [#allocation9], %s1378
          %1380 = dma.done %s1376, 512
        $region64: #{tpu_custom_call.1} parent=59 // pred_fallthru
          _
      $region60: #{tpu_custom_call.1} parent=5 // pred_fallthru
        _
    $region6: #{tpu_custom_call.1} parent=1 // loop_footer
      %s20 = sadd.s32 1, %s16
    $region7: #{tpu_custom_call.1} parent=1 // loop_footer_branch
      %15 = sbr.rel target = $region3
    $region8: #{tpu_custom_call.1} parent=1 // loop_exit
      _
    %1381 = vsyncpa [#allocation4], 1
    %s1382 = scalar_lea.sflag [#allocation4], 1
    %1383 = vsyncpa %s1382, 1
    %1384 = vsyncpa [#allocation7], 1
    %s1385 = scalar_lea.sflag [#allocation7], 1
    %1386 = vsyncpa %s1385, 1
    %1387 = vsyncpa [#allocation5], 1
    %s1388 = scalar_lea.sflag [#allocation5], 1
    %1389 = vsyncpa %s1388, 1

</llo_original>
